<compile_context>
chip_gen: v5e
topology: v5e:2x2
jax: 0.10.0
libtpu: 0.0.40
codegen_flags: <defaults>
</compile_context>

<pallas_src>
import functools
import math

import jax
import jax.numpy as jnp
import numpy as np
from jax import lax
from jax.experimental import pallas as pl
from jax.experimental.pallas import tpu as pltpu

# ---------------------------------------------------------------------------
# Physical constants (copied verbatim from the PyTorch module)
# ---------------------------------------------------------------------------
P_A1 = 100000.0
P_A2 = 0.0
P_inf = 100000.0
R_E = 10.0 / 1000000.0
c_L = 1497.251785455527
f = 20000.0
f2 = 0.0
gam = 1.4
mu_L = 0.0008902125058209557
p_v = 3166.775638952003
ro_L = 997.0639504998557
sigma = 0.071977583160056
theta = 0.0


def _keller_constants():
    """Deterministic parameter setup — mirrors Keller.__init__ exactly."""
    C = np.zeros(13)
    twr = 1.0 / (R_E * f)
    C[0] = (P_inf - p_v + 2 * sigma / R_E) / ro_L * twr * twr
    C[1] = (1 - 3 * gam) / (ro_L * c_L) * (P_inf - p_v + 2 * sigma / R_E) * twr
    C[2] = (P_inf - p_v) / ro_L * twr * twr
    C[3] = 2 * sigma / (ro_L * R_E) * twr * twr
    C[4] = 4 * mu_L / (ro_L * R_E * R_E) / f
    C[5] = P_A1 / ro_L * twr * twr
    C[6] = P_A2 / ro_L * twr * twr
    C[7] = R_E * 2 * math.pi * f * P_A1 / (ro_L * c_L) * twr * twr
    C[8] = R_E * 2 * math.pi * f * P_A2 / (ro_L * c_L) * twr * twr
    C[9] = R_E * f / c_L
    C[10] = 3 * gam
    C[11] = f2 / f
    C[12] = theta
    return C


_C = _keller_constants()
(_C0, _C1, _C2, _C3, _C4, _C5, _C6, _C7, _C8, _C9, _C10, _C11, _C12) = (
    float(c) for c in _C
)
_TWO_PI = 2.0 * math.pi

_SUBLANES = 8
_LANES = 128
_BLK = _SUBLANES * _LANES            # 1024 states per grid block (full vreg tiles)


# ---------------------------------------------------------------------------
# Shared in-kernel RHS core (vectorized over full (8,128) tiles)
# ---------------------------------------------------------------------------
def _keller_rhs_core(x0, x1, drive, drive_dot):
    """Keller-Miksis RHS on (S,128) f32 tiles; drive/drive_dot are scalars.

    Evaluates d2R/dt2 = N/D as (x0*N)/(x0*D):
      * no 1/x0 reciprocal,
      * rx0**C10 becomes x0**(1-C10) = exp((1-C10)*log(x0))  (1 log + 1 exp),
      * (C3 + C4*x1)*rx0 becomes (C3 + C4*x1).
    The denominator reciprocal is approx vrcp + 2 Newton-Raphson refinements
    (full fp32 accuracy, VALU-side).
    NOTE: log(x0) is NaN for R <= 0 (physically positive) — matches the
    reference module semantics, no clamp applied.
    """
    pow_term = jnp.exp((1.0 - _C10) * jnp.log(x0))          # x0 ** (1 - C10)
    one_p = 1.0 + _C9 * x1
    x0sq = x0 * x0
    Np = ((_C0 + _C1 * x1) * pow_term
          - _C2 * (one_p * x0)
          - (_C3 + _C4 * x1)
          - (1.5 - 0.5 * _C9 * x1) * (x1 * x1) * x0
          - drive * (one_p * x0)
          - x0sq * drive_dot)
    Dp = x0sq * (1.0 - _C9 * x1) + (_C4 * _C9) * x0
    r = pl.reciprocal(Dp, approx=True)
    r = r * (2.0 - Dp * r)        # NR refinement 1 (~24-bit)
    r = r * (2.0 - Dp * r)        # NR refinement 2 (fp32-exact)
    return x1, Np * r


def _drive_terms(t):
    """Time-only drive terms (scalar t)."""
    drive = _C5 * jnp.sin(_TWO_PI * t)
    drive_dot = _C7 * jnp.cos(_TWO_PI * t)
    if _C6 != 0.0 or _C8 != 0.0:
        # Second harmonic — exactly zero for this parameter set, elided at trace time.
        drive = drive + _C6 * jnp.sin(_TWO_PI * _C11 * t + _C12)
        drive_dot = drive_dot + _C8 * jnp.cos(_TWO_PI * _C11 * t + _C12)
    return drive, drive_dot


# ---------------------------------------------------------------------------
# Kernel 1: batched RHS evaluation (one forward pass, many states, same t)
# ---------------------------------------------------------------------------
def _keller_rhs_kernel(t_ref, x_ref, o_ref):
    drive, drive_dot = _drive_terms(t_ref[0])
    dx0, dx1 = _keller_rhs_core(x_ref[0, :, :], x_ref[1, :, :], drive, drive_dot)
    o_ref[0, :, :] = dx0
    o_ref[1, :, :] = dx1


def keller_rhs_batched(t, x):
    """Batched Keller RHS.  x: (2, B) float32 (row 0 = R, row 1 = dR/dt),
    B a multiple of 1024.  Returns (2, B) float32 = [dR/dt, d2R/dt2]."""
    x = jnp.asarray(x, jnp.float32)
    assert x.ndim == 2 and x.shape[0] == 2 and x.shape[1] % _BLK == 0
    B = x.shape[1]
    S = B // _LANES
    nb = S // _SUBLANES
    x3 = x.reshape(2, S, _LANES)
    t_arr = jnp.asarray(t, jnp.float32).reshape((1,))
    out = pl.pallas_call(
        _keller_rhs_kernel,
        out_shape=jax.ShapeDtypeStruct((2, S, _LANES), jnp.float32),
        grid_spec=pltpu.PrefetchScalarGridSpec(
            num_scalar_prefetch=1,                       # t -> SMEM
            grid=(nb,),
            in_specs=[pl.BlockSpec((2, _SUBLANES, _LANES),
                                   lambda i, t_ref: (0, i, 0))],
            out_specs=pl.BlockSpec((2, _SUBLANES, _LANES),
                                   lambda i, t_ref: (0, i, 0)),
        ),
        compiler_params=pltpu.CompilerParams(dimension_semantics=("parallel",)),
    )(t_arr, x3)
    return out.reshape(2, B)


def keller_forward(t, x):
    """Exact semantics of Keller.forward(t, x): t scalar, x (1, 2) float32,
    returns (1, 2) float32 = [[dR/dt, d2R/dt2]].

    The single state is splat across one full lane block (one broadcast op);
    every lane holds the real (R>0) state, so log/reciprocal are safe.
    """
    x = jnp.asarray(x, jnp.float32).reshape(1, 2)
    xb = jnp.broadcast_to(x.T, (2, _BLK))       # (2, 1024) splat
    out = keller_rhs_batched(t, xb)
    return out[:, 0].reshape(1, 2)


# ---------------------------------------------------------------------------
# Kernel 2: fused fixed-step RK4 integrator — the whole time loop runs inside
# one pallas_call.  Drive tables (all half-step time points) live in SMEM, so
# the inner loop contains no sin/cos at all.
# ---------------------------------------------------------------------------
def _keller_rk4_kernel(dt_ref, drv_ref, dvd_ref, x_ref, o_ref, *, n_steps):
    dt = dt_ref[0]
    h = 0.5 * dt
    c6 = dt * (1.0 / 6.0)

    x0_init = x_ref[0, :, :]
    x1_init = x_ref[1, :, :]

    def step(i, carry):
        x0, x1 = carry
        j = 2 * i
        d1, dd1 = drv_ref[j], dvd_ref[j]
        d2, dd2 = drv_ref[j + 1], dvd_ref[j + 1]       # shared by k2 and k3
        d3, dd3 = drv_ref[j + 2], dvd_ref[j + 2]
        k1a, k1b = _keller_rhs_core(x0, x1, d1, dd1)
        k2a, k2b = _keller_rhs_core(x0 + h * k1a, x1 + h * k1b, d2, dd2)
        k3a, k3b = _keller_rhs_core(x0 + h * k2a, x1 + h * k2b, d2, dd2)
        k4a, k4b = _keller_rhs_core(x0 + dt * k3a, x1 + dt * k3b, d3, dd3)
        x0 = x0 + c6 * (k1a + 2.0 * (k2a + k3a) + k4a)
        x1 = x1 + c6 * (k1b + 2.0 * (k2b + k3b) + k4b)
        return x0, x1

    x0_fin, x1_fin = lax.fori_loop(0, n_steps, step, (x0_init, x1_init), unroll=2)
    o_ref[0, :, :] = x0_fin
    o_ref[1, :, :] = x1_fin


def keller_rk4(t0, x, *, dt, n_steps):
    """Integrate n_steps of fixed-step RK4 of the Keller RHS for a (2, B)
    batch (B multiple of 1024) inside a single Pallas kernel.  dt is passed
    dynamically (SMEM), so sweeping dt does not recompile; n_steps is static
    (fixes table length / loop bound)."""
    x = jnp.asarray(x, jnp.float32)
    assert x.ndim == 2 and x.shape[0] == 2 and x.shape[1] % _BLK == 0
    n_steps = int(n_steps)
    B = x.shape[1]
    S = B // _LANES
    nb = S // _SUBLANES
    x3 = x.reshape(2, S, _LANES)

    dt_f = jnp.asarray(dt, jnp.float32)
    t0_f = jnp.asarray(t0, jnp.float32)
    # Drive tables at every half-step time point (2*n_steps + 1 entries).
    # TODO(synk): for very long integrations rebase the 2*pi*t phase (fp32
    # precision) or build the tables in f64 on the host.
    jj = jnp.arange(2 * n_steps + 1, dtype=jnp.float32)
    tj = t0_f + 0.5 * dt_f * jj
    drive_tbl = _C5 * jnp.sin(_TWO_PI * tj)
    drive_dot_tbl = _C7 * jnp.cos(_TWO_PI * tj)
    if _C6 != 0.0 or _C8 != 0.0:
        drive_tbl = drive_tbl + _C6 * jnp.sin(_TWO_PI * _C11 * tj + _C12)
        drive_dot_tbl = drive_dot_tbl + _C8 * jnp.cos(_TWO_PI * _C11 * tj + _C12)

    kern = functools.partial(_keller_rk4_kernel, n_steps=n_steps)
    cost = pl.CostEstimate(
        flops=int(n_steps) * 160 * B,            # ~4 RHS * ~35 flops + combine
        transcendentals=int(n_steps) * 12 * B,   # 4 RHS * (log + exp + vrcp)
        bytes_accessed=2 * 2 * B * 4,            # read + write the (2,B) state
    )
    out = pl.pallas_call(
        kern,
        out_shape=jax.ShapeDtypeStruct((2, S, _LANES), jnp.float32),
        grid_spec=pltpu.PrefetchScalarGridSpec(
            num_scalar_prefetch=3,               # dt, drive table, drive_dot table
            grid=(nb,),
            in_specs=[pl.BlockSpec((2, _SUBLANES, _LANES),
                                   lambda i, dt_r, dr_r, dd_r: (0, i, 0))],
            out_specs=pl.BlockSpec((2, _SUBLANES, _LANES),
                                   lambda i, dt_r, dr_r, dd_r: (0, i, 0)),
        ),
        compiler_params=pltpu.CompilerParams(dimension_semantics=("parallel",)),
        cost_estimate=cost,
    )(dt_f.reshape((1,)), drive_tbl, drive_dot_tbl, x3)
    return out.reshape(2, B)


# ---------------------------------------------------------------------------
# Pure-numpy references (float64) — mirror Keller.ode / Keller.forward
# ---------------------------------------------------------------------------
def _rhs_ref(t, x0, x1):
    C = _C
    rx0 = 1.0 / x0
    drive = C[5] * np.sin(2.0 * np.pi * t) + C[6] * np.sin(2.0 * np.pi * C[11] * t + C[12])
    drive_dot = C[7] * np.cos(2.0 * np.pi * t) + C[8] * np.cos(2.0 * np.pi * C[11] * t + C[12])
    N = ((C[0] + C[1] * x1) * rx0 ** C[10]
         - C[2] * (1.0 + C[9] * x1)
         - C[3] * rx0 - C[4] * x1 * rx0
         - (1.5 - 0.5 * C[9] * x1) * x1 * x1
         - drive * (1.0 + C[9] * x1)
         - x0 * drive_dot)
    D = x0 - C[9] * x0 * x1 + C[4] * C[9]
    return x1, N / D


def _rk4_ref(t0, x, dt, n_steps):
    x = np.asarray(x, np.float64).copy()
    for i in range(n_steps):
        t = t0 + i * dt
        k1 = np.stack(_rhs_ref(t, x[0], x[1]))
        k2 = np.stack(_rhs_ref(t + 0.5 * dt, x[0] + 0.5 * dt * k1[0], x[1] + 0.5 * dt * k1[1]))
        k3 = np.stack(_rhs_ref(t + 0.5 * dt, x[0] + 0.5 * dt * k2[0], x[1] + 0.5 * dt * k2[1]))
        k4 = np.stack(_rhs_ref(t + dt, x[0] + dt * k3[0], x[1] + dt * k3[1]))
        x = x + (dt / 6.0) * (k1 + 2.0 * k2 + 2.0 * k3 + k4)
    return x


if __name__ == "__main__":
    key = jax.random.PRNGKey(0)
    k0, k1 = jax.random.split(key)

    B = 2 * _BLK                                   # 2048 states -> 2 grid blocks
    t = jnp.float32(0.25)
    x0 = 1.0 + 0.1 * jax.random.uniform(k0, (B,), jnp.float32)   # radius near 1
    x1 = 0.1 * jax.random.normal(k1, (B,), jnp.float32)          # small velocity
    xb = jnp.stack([x0, x1], axis=0)               # (2, B) float32

    # --- 1) batched RHS evaluation ----------------------------------------
    d = jax.block_until_ready(keller_rhs_batched(t, xb))
    x0n = np.asarray(x0, np.float64)
    x1n = np.asarray(x1, np.float64)
    r0, r1 = _rhs_ref(float(t), x0n, x1n)
    np.testing.assert_allclose(np.asarray(d[0]), r0, rtol=1e-4, atol=1e-4)
    np.testing.assert_allclose(np.asarray(d[1]), r1, rtol=1e-4, atol=1e-4)

    # --- 2) single-state module semantics (Keller.forward) -----------------
    x_single = xb[:, :1].T.reshape(1, 2)
    out = jax.block_until_ready(keller_forward(t, x_single))
    ref_single = np.array([[x1n[0], r1[0]]], dtype=np.float64)
    np.testing.assert_allclose(np.asarray(out), ref_single, rtol=1e-4, atol=1e-4)

    # --- 3) fused RK4 time loop inside one kernel ---------------------------
    dt, n_steps = 1e-5, 32
    xf = jax.block_until_ready(keller_rk4(t, xb, dt=dt, n_steps=n_steps))
    ref_traj = _rk4_ref(float(t), np.stack([x0n, x1n]), dt, n_steps)
    np.testing.assert_allclose(np.asarray(xf), ref_traj, rtol=1e-3, atol=1e-3)

    print("KERNEL_OK")
</pallas_src>

<mosaic_0001>
module attributes {stable_mosaic.version = 11 : i64} {
  func.func @_keller_rhs_kernel(%arg0: i32, %arg1: memref<1xf32, #tpu.memory_space<smem>>, %arg2: memref<2x8x128xf32, #tpu.memory_space<vmem>>, %arg3: memref<2x8x128xf32, #tpu.memory_space<vmem>>) attributes {dimension_semantics = [#tpu.dimension_semantics<parallel>], iteration_bounds = array<i64: 2>, scalar_prefetch = 1 : i64, scratch_operands = 0 : i64, tpu.core_type = #tpu.core_type<tc>, window_params = [{transform_indices = @transform_0, window_bounds = array<i64: 2, 8, 128>}, {transform_indices = @transform_1, window_bounds = array<i64: 2, 8, 128>}]} {
    %c0 = arith.constant 0 : index
    %0 = memref.load %arg1[%c0] : memref<1xf32, #tpu.memory_space<smem>>
    %cst = arith.constant 6.28318548 : f32
    %1 = arith.mulf %cst, %0 : f32
    %2 = math.sin %1 : f32
    %cst_0 = arith.constant 2507.36182 : f32
    %3 = arith.mulf %cst_0, %2 : f32
    %cst_1 = arith.constant 6.28318548 : f32
    %4 = arith.mulf %cst_1, %0 : f32
    %5 = math.cos %4 : f32
    %cst_2 = arith.constant 2.10441804 : f32
    %6 = arith.mulf %cst_2, %5 : f32
    %c0_3 = arith.constant 0 : index
    %c0_4 = arith.constant 0 : index
    %c0_5 = arith.constant 0 : index
    %7 = vector.load %arg2[%c0_3, %c0_4, %c0_5] : memref<2x8x128xf32, #tpu.memory_space<vmem>>, vector<1x8x128xf32>
    %8 = vector.shape_cast %7 : vector<1x8x128xf32> to vector<8x128xf32>
    %c1 = arith.constant 1 : index
    %c0_6 = arith.constant 0 : index
    %c0_7 = arith.constant 0 : index
    %9 = vector.load %arg2[%c1, %c0_6, %c0_7] : memref<2x8x128xf32, #tpu.memory_space<vmem>>, vector<1x8x128xf32>
    %10 = vector.shape_cast %9 : vector<1x8x128xf32> to vector<8x128xf32>
    %11 = math.log %8 : vector<8x128xf32>
    %cst_8 = arith.constant -3.200000e+00 : f32
    %12 = vector.broadcast %cst_8 : f32 to vector<8x128xf32>
    %13 = arith.mulf %12, %11 : vector<8x128xf32>
    %14 = math.exp %13 : vector<8x128xf32>
    %cst_9 = arith.constant 1.33578069E-4 : f32
    %15 = vector.broadcast %cst_9 : f32 to vector<8x128xf32>
    %16 = arith.mulf %15, %10 : vector<8x128xf32>
    %cst_10 = arith.constant 1.000000e+00 : f32
    %17 = vector.broadcast %cst_10 : f32 to vector<8x128xf32>
    %18 = arith.addf %17, %16 : vector<8x128xf32>
    %19 = arith.mulf %8, %8 : vector<8x128xf32>
    %cst_11 = arith.constant -1.19211769 : f32
    %20 = vector.broadcast %cst_11 : f32 to vector<8x128xf32>
    %21 = arith.mulf %20, %10 : vector<8x128xf32>
    %cst_12 = arith.constant 2788.90698 : f32
    %22 = vector.broadcast %cst_12 : f32 to vector<8x128xf32>
    %23 = arith.addf %22, %21 : vector<8x128xf32>
    %24 = arith.mulf %23, %14 : vector<8x128xf32>
    %25 = arith.mulf %18, %8 : vector<8x128xf32>
    %cst_13 = arith.constant 2427.95923 : f32
    %26 = vector.broadcast %cst_13 : f32 to vector<8x128xf32>
    %27 = arith.mulf %26, %25 : vector<8x128xf32>
    %28 = arith.subf %24, %27 : vector<8x128xf32>
    %cst_14 = arith.constant 1.78566778 : f32
    %29 = vector.broadcast %cst_14 : f32 to vector<8x128xf32>
    %30 = arith.mulf %29, %10 : vector<8x128xf32>
    %cst_15 = arith.constant 360.947662 : f32
    %31 = vector.broadcast %cst_15 : f32 to vector<8x128xf32>
    %32 = arith.addf %31, %30 : vector<8x128xf32>
    %33 = arith.subf %28, %32 : vector<8x128xf32>
    %cst_16 = arith.constant 6.67890344E-5 : f32
    %34 = vector.broadcast %cst_16 : f32 to vector<8x128xf32>
    %35 = arith.mulf %34, %10 : vector<8x128xf32>
    %cst_17 = arith.constant 1.500000e+00 : f32
    %36 = vector.broadcast %cst_17 : f32 to vector<8x128xf32>
    %37 = arith.subf %36, %35 : vector<8x128xf32>
    %38 = arith.mulf %10, %10 : vector<8x128xf32>
    %39 = arith.mulf %37, %38 : vector<8x128xf32>
    %40 = arith.mulf %39, %8 : vector<8x128xf32>
    %41 = arith.subf %33, %40 : vector<8x128xf32>
    %42 = arith.mulf %18, %8 : vector<8x128xf32>
    %43 = vector.broadcast %3 : f32 to vector<8x128xf32>
    %44 = arith.mulf %43, %42 : vector<8x128xf32>
    %45 = arith.subf %41, %44 : vector<8x128xf32>
    %46 = vector.broadcast %6 : f32 to vector<8x128xf32>
    %47 = arith.mulf %19, %46 : vector<8x128xf32>
    %48 = arith.subf %45, %47 : vector<8x128xf32>
    %cst_18 = arith.constant 1.33578069E-4 : f32
    %49 = vector.broadcast %cst_18 : f32 to vector<8x128xf32>
    %50 = arith.mulf %49, %10 : vector<8x128xf32>
    %cst_19 = arith.constant 1.000000e+00 : f32
    %51 = vector.broadcast %cst_19 : f32 to vector<8x128xf32>
    %52 = arith.subf %51, %50 : vector<8x128xf32>
    %53 = arith.mulf %19, %52 : vector<8x128xf32>
    %cst_20 = arith.constant 2.3852606E-4 : f32
    %54 = vector.broadcast %cst_20 : f32 to vector<8x128xf32>
    %55 = arith.mulf %54, %8 : vector<8x128xf32>
    %56 = arith.addf %53, %55 : vector<8x128xf32>
    %57 = tpu.reciprocal %56 {approx = true} : vector<8x128xf32> -> vector<8x128xf32>
    %58 = arith.mulf %56, %57 : vector<8x128xf32>
    %cst_21 = arith.constant 2.000000e+00 : f32
    %59 = vector.broadcast %cst_21 : f32 to vector<8x128xf32>
    %60 = arith.subf %59, %58 : vector<8x128xf32>
    %61 = arith.mulf %57, %60 : vector<8x128xf32>
    %62 = arith.mulf %56, %61 : vector<8x128xf32>
    %cst_22 = arith.constant 2.000000e+00 : f32
    %63 = vector.broadcast %cst_22 : f32 to vector<8x128xf32>
    %64 = arith.subf %63, %62 : vector<8x128xf32>
    %65 = arith.mulf %61, %64 : vector<8x128xf32>
    %66 = arith.mulf %48, %65 : vector<8x128xf32>
    %c0_23 = arith.constant 0 : index
    %c0_24 = arith.constant 0 : index
    %c0_25 = arith.constant 0 : index
    %67 = vector.load %arg3[%c0_23, %c0_24, %c0_25] : memref<2x8x128xf32, #tpu.memory_space<vmem>>, vector<1x8x128xf32>
    %68 = vector.shape_cast %67 : vector<1x8x128xf32> to vector<8x128xf32>
    %69 = vector.shape_cast %10 : vector<8x128xf32> to vector<1x8x128xf32>
    tpu.vector_store %arg3[%c0_23, %c0_24, %c0_25], %69 {strides = array<i32>} : memref<2x8x128xf32, #tpu.memory_space<vmem>>, vector<1x8x128xf32>,
    %c1_26 = arith.constant 1 : index
    %c0_27 = arith.constant 0 : index
    %c0_28 = arith.constant 0 : index
    %70 = vector.load %arg3[%c1_26, %c0_27, %c0_28] : memref<2x8x128xf32, #tpu.memory_space<vmem>>, vector<1x8x128xf32>
    %71 = vector.shape_cast %70 : vector<1x8x128xf32> to vector<8x128xf32>
    %72 = vector.shape_cast %66 : vector<8x128xf32> to vector<1x8x128xf32>
    tpu.vector_store %arg3[%c1_26, %c0_27, %c0_28], %72 {strides = array<i32>} : memref<2x8x128xf32, #tpu.memory_space<vmem>>, vector<1x8x128xf32>,
    return
  }
  func.func @transform_0(%arg0: i32, %arg1: memref<1xf32, #tpu.memory_space<smem>>) -> (i32, i32, i32) {
    %c0_i32 = arith.constant 0 : i32
    %c0_i32_0 = arith.constant 0 : i32
    %c0_i32_1 = arith.constant 0 : i32
    return %c0_i32, %arg0, %c0_i32_0 : i32, i32, i32
  }
  func.func @transform_1(%arg0: i32, %arg1: memref<1xf32, #tpu.memory_space<smem>>) -> (i32, i32, i32) {
    %c0_i32 = arith.constant 0 : i32
    %c0_i32_0 = arith.constant 0 : i32
    %c0_i32_1 = arith.constant 0 : i32
    return %c0_i32, %arg0, %c0_i32_0 : i32, i32, i32
  }
}

</mosaic_0001>

<llo_original>
// kernel: tpu_custom_call.1
$region0: #{tpu_custom_call.1}
  #allocation0 [shape = 'u32[]', space=smem, size = 0x4, offset = 0x4, fixed_abs, tag = 'smem constant byte address 0x4 - core index']
  #allocation1 [shape = 'u32[72,128]{1,0:T(1,128)}', space=vmem, size = 0x9000, scoped, tag = 'internal scratch']
  #allocation2 [shape = 's32[1]{0}', space=sflag, size = 0x4, scoped, tag = 'scoped memory for tpu_custom_call.1']
  #allocation3 [shape = 'f32[1]{0:T(128)S(6)}', space=smem, size = 0x200, scoped, tag = 'prefetched SMEM operand 0']
  %s0 = inlined_call_operand.<no memory space> [shape: f32[1], index: 0, kind: input, shape index: {}]
  %s1 = inlined_call_operand.hbm [shape: f32[2,16,128], index: 1, kind: input, shape index: {}]
  %s2 = inlined_call_operand.hbm [shape: f32[2,16,128], index: 2, kind: output, shape index: {}]
  %s3 = sld [smem:[#allocation0]]
  $region41: #{tpu_custom_call.1} parent=0
    _
  %s5 = ssub.s32 1, %s3
  %s6 = scalar_select 0, %s5, %s3
  %7 = sst [smem:[#allocation3]] %s0
  $region1: #{tpu_custom_call.1} parent=0
    #allocation4 [shape = 'u8[16384]{0}', space=vmem, size = 0x4000, scoped, tag = 'input window, operand 1']
    #allocation5 [shape = 's32[2]{0}', space=sflag, size = 0x8, scoped, tag = 'scoped memory for tpu_custom_call.1']
    #allocation6 [shape = 's32[2]{0}', space=sflag, size = 0x8, scoped, tag = 'scoped memory for tpu_custom_call.1']
    #allocation7 [shape = 'u8[16384]{0}', space=vmem, size = 0x4000, scoped, tag = 'output window, operand 0']
    %8 = vsyncpa [#allocation5], 0
    %s9 = scalar_lea.sflag [#allocation5], 1
    %10 = vsyncpa %s9, 0
    %11 = vsyncpa [#allocation6], 0
    %s12 = scalar_lea.sflag [#allocation6], 1
    %13 = vsyncpa %s12, 0
    loop: start=0, step=1, limit=4
    $region2: #{tpu_custom_call.1} parent=1 // loop_pre_header
      _
    $region3: #{tpu_custom_call.1} parent=1 // loop_header
      %s15 = sphi 0, %s19
      %p16 = scmp.ge.s32.totalorder %s15, 4
      %s25 = sphi 0, %s27
      %s28 = sphi 0, %s25
      %s29 = sphi 0, %s28
      %s45 = sphi 0, %s29
      %s51 = sphi 0, %s53
      %s54 = sphi 0, %s51
      %s55 = sphi 0, %s54
      %s71 = sphi 0, %s55
    $region4: #{tpu_custom_call.1} parent=1 // loop_header_branch
      %18 = sbr.rel (%p16) target = $region8
    $region5: #{tpu_custom_call.1} parent=1 // loop_body
      %s20 = ssub.s32 %s15, 1
      %s21 = ssub.s32 %s15, 2
      %s22 = sadd.s32 %s15, 1
      %s23 = ssub.s32 %s15, %s22
      %p24 = scmp.eq.s32.totalorder %s23, 0
      %s26 = sadd.s32 %s25, 1
      %s27 = scalar_select %p24, %s25, %s26
      %p30 = pneg %p24
      %p31 = scmp.eq.s32.totalorder %s15, 1
      %p32 = por %p30, %p31
      %p33 = scmp.ne.s32.totalorder %s25, %s28
      %p34 = scmp.eq.s32.totalorder %s15, 0
      %p35 = por %p33, %p34
      %p36 = scmp.ne.s32.totalorder %s25, %s28
      %p37 = scmp.eq.s32.totalorder %s20, 1
      %p38 = por %p36, %p37
      %p39 = scmp.ne.s32.totalorder %s28, %s29
      %p40 = scmp.eq.s32.totalorder %s20, 0
      %p41 = por %p39, %p40
      %p42 = scmp.ne.s32.totalorder %s28, %s29
      %p43 = scmp.eq.s32.totalorder %s21, 1
      %p44 = por %p42, %p43
      %p46 = scmp.ne.s32.totalorder %s29, %s45
      %p47 = scmp.eq.s32.totalorder %s21, 0
      %p48 = por %p46, %p47
      %s49 = ssub.s32 %s15, %s22
      %p50 = scmp.eq.s32.totalorder %s49, 0
      %s52 = sadd.s32 %s51, 1
      %s53 = scalar_select %p50, %s51, %s52
      %p56 = pneg %p50
      %p57 = scmp.eq.s32.totalorder %s15, 1
      %p58 = por %p56, %p57
      %p59 = scmp.ne.s32.totalorder %s51, %s54
      %p60 = scmp.eq.s32.totalorder %s15, 0
      %p61 = por %p59, %p60
      %p62 = scmp.ne.s32.totalorder %s51, %s54
      %p63 = scmp.eq.s32.totalorder %s20, 1
      %p64 = por %p62, %p63
      %p65 = scmp.ne.s32.totalorder %s54, %s55
      %p66 = scmp.eq.s32.totalorder %s20, 0
      %p67 = por %p65, %p66
      %p68 = scmp.ne.s32.totalorder %s54, %s55
      %p69 = scmp.eq.s32.totalorder %s21, 1
      %p70 = por %p68, %p69
      %p72 = scmp.ne.s32.totalorder %s55, %s71
      %p73 = scmp.eq.s32.totalorder %s21, 0
      %p74 = por %p72, %p73
      %p75 = scmp.le.s32.totalorder 1, %s15
      %p76 = scmp.lt.s32.totalorder %s15, 3
      %p77 = pnand %p75, %p76
      %p78 = pneg %p77
      // Predicated region
      $region9: #{tpu_custom_call.1} parent=5 // pred_check
        _
      $region10: #{tpu_custom_call.1} parent=5 // pred_check_branch
        %80 = sbr.rel (%p77) target = $region12
      $region11: #{tpu_custom_call.1} parent=5 // pred_region
        %s81 = ssub.s32 %s15, 1
      $region12: #{tpu_custom_call.1} parent=5 // pred_fallthru
        _
      %p82 = scmp.lt.s32.totalorder %s15, 2
      // Predicated region
      $region13: #{tpu_custom_call.1} parent=5 // pred_check
        %p83 = pneg %p82
      $region14: #{tpu_custom_call.1} parent=5 // pred_check_branch
        %85 = sbr.rel (%p83) target = $region16
      $region15: #{tpu_custom_call.1} parent=5 // pred_region
        // Predicated region
        $region17: #{tpu_custom_call.1} parent=15 // pred_check
          %p86 = pneg %p35
        $region18: #{tpu_custom_call.1} parent=15 // pred_check_branch
          %88 = sbr.rel (%p86) target = $region20
        $region19: #{tpu_custom_call.1} parent=15 // pred_region
          %s89 = sand.u32 %s25, 1
          %s90 = scalar_lea.sflag [#allocation5], %s89
          %s91 = sand.u32 %s25, 1
          %s92 = smul.addr %s91, 16
          %s93 = scalar_lea.vmem [#allocation4], %s92
          %95 = vsyncadd %s90, 0
          %s96 = smul.addr %s15, 8
          %s97 = scalar_lea.hbm %s1, %s96
          %s98 = sshll.u32 %s97, 4
          %s99 = int_to_ptr.hbm [resolvable:$true] %s98
          %s100 = sshll.u32 %s93, 4
          %s101 = int_to_ptr.vmem [resolvable:$true] %s100
          %106 = dma.hbm_to_vmem [thread:$0]  %s99, 256, %s101, %s90, 256, 128, 8
        $region20: #{tpu_custom_call.1} parent=15 // pred_fallthru
          _
      $region16: #{tpu_custom_call.1} parent=5 // pred_fallthru
        _
      %p107 = scmp.le.s32.totalorder 1, %s15
      %p108 = scmp.lt.s32.totalorder %s15, 3
      %p109 = pnand %p107, %p108
      %p110 = pneg %p109
      // Predicated region
      $region21: #{tpu_custom_call.1} parent=5 // pred_check
        _
      $region22: #{tpu_custom_call.1} parent=5 // pred_check_branch
        %112 = sbr.rel (%p109) target = $region24
      $region23: #{tpu_custom_call.1} parent=5 // pred_region
        %s113 = ssub.s32 %s15, 1
        %s114 = sand.u32 %s28, 1
        %s115 = scalar_lea.sflag [#allocation5], %s114
        %s116 = sand.u32 %s28, 1
        %s117 = smul.addr %s116, 16
        %s118 = scalar_lea.vmem [#allocation4], %s117
        // Predicated region
        $region25: #{tpu_custom_call.1} parent=23 // pred_check
          %p119 = pneg %p41
        $region26: #{tpu_custom_call.1} parent=23 // pred_check_branch
          %121 = sbr.rel (%p119) target = $region28
        $region27: #{tpu_custom_call.1} parent=23 // pred_region
          %123 = dma.done %s115, 256
        $region28: #{tpu_custom_call.1} parent=23 // pred_fallthru
          _
        %s124 = sand.u32 %s28, 1
        %s125 = scalar_lea.sflag [#allocation5], %s124
        %s126 = sand.u32 %s28, 1
        %s127 = smul.addr %s126, 16
        %s128 = scalar_lea.vmem [#allocation4], %s127
        %p129 = pneg %p41
        %p130 = pneg %p38
        %p131 = pneg %p67
        %p132 = pneg %p64
        %s133 = sand.u32 %s54, 1
        %s134 = scalar_lea.sflag [#allocation6], %s133
        %s135 = sand.u32 %s54, 1
        %s136 = smul.addr %s135, 16
        %s137 = scalar_lea.vmem [#allocation7], %s136
        %s138 = sld [smem:[#allocation3]]
        %s139 = smul.f32 %s138, 6.2831855
        %v140 = vstv %s139
        %v141 = vand.u32 2147483647, %v140
        %vm142 = vcmp.le.f32.partialorder %v141, 0.7853982
        %vm143 = vcmp.lt.s32.totalorder %v140, 0
        %v144 = vand.u32 %v140, 2139095040
        %v145 = vshrl.u32 %v144, 23
        %v146 = vsub.s32 %v145, 127
        %v147 = vand.u32 2147483647, %v140
        %v148 = vand.u32 %v147, 8388607
        %v149 = vor.u32 %v148, 8388608
        %v150 = vsub.s32 0, %v149
        %v151 = vadd.s32 %v146, 1
        %vm152 = vcmp.gt.s32.totalorder %v151, 0
        %v153 = vsel %vm152, %v151, 0
        %v154 = vshrl.u32 %v153, 5
        %v155 = vand.u32 %v153, 31
        %v156 = vsub.s32 32, %v155
        %v157 = vshrl.u32 683565275, %v156
        %v158 = vshll.u32 683565275, %v155
        %v159 = vshrl.u32 2475754826, %v156
        %v160 = vor.u32 %v158, %v159
        %v161 = vshll.u32 2475754826, %v155
        %v162 = vshrl.u32 2131351028, %v156
        %v163 = vor.u32 %v161, %v162
        %v164 = vshll.u32 2131351028, %v155
        %v165 = vshrl.u32 2102212464, %v156
        %v166 = vor.u32 %v164, %v165
        %v167 = vshll.u32 2102212464, %v155
        %v168 = vshrl.u32 920167782, %v156
        %v169 = vor.u32 %v167, %v168
        %v170 = vshll.u32 920167782, %v155
        %v171 = vshrl.u32 1326507024, %v156
        %v172 = vor.u32 %v170, %v171
        %vm173 = vcmp.lt.s32.totalorder %v154, 1
        %vm174 = vcmp.lt.s32.totalorder %v154, 2
        %vm175 = vcmp.lt.s32.totalorder %v154, 3
        %vm176 = vcmp.lt.s32.totalorder %v154, 4
        %v177 = vsel %vm173, %v157, %v160
        %v178 = vsel %vm176, %v166, 2102212464
        %v179 = vsel %vm175, %v163, %v178
        %v180 = vsel %vm174, %v177, %v179
        %v181 = vsel %vm173, %v160, %v163
        %v182 = vsel %vm176, %v169, 920167782
        %v183 = vsel %vm175, %v166, %v182
        %v184 = vsel %vm174, %v181, %v183
        %v185 = vsel %vm173, %v163, %v166
        %v186 = vsel %vm176, %v172, 1326507024
        %v187 = vsel %vm175, %v169, %v186
        %v188 = vsel %vm174, %v185, %v187
        %v189 = vshll.u32 %v149, 8
        %v190 = vand.u32 %v189, 65535
        %v191 = vshrl.u32 %v189, 16
        %v192 = vand.u32 %v188, 65535
        %v193 = vshrl.u32 %v188, 16
        %v194 = vmul.u32 %v190, %v192
        %v195 = vmul.u32 %v190, %v193
        %v196 = vmul.u32 %v191, %v192
        %v197 = vmul.u32 %v191, %v193
        %v198 = vshll.u32 %v195, 16
        %v199 = vshrl.u32 %v195, 16
        %v200 = vshll.u32 %v196, 16
        %v201 = vshrl.u32 %v196, 16
        %vm202 = vc.u32 %v194, %v198
        %v203 = vsel %vm202, 1, 0
        %v204 = vadd.s32 %v194, %v198
        %v205 = vadd.s32 %v197, %v203
        %vm206 = vc.u32 %v204, %v200
        %v207 = vsel %vm206, 1, 0
        %v208 = vadd.s32 %v204, %v200
        %v209 = vadd.s32 %v205, %v207
        %v210 = vadd.s32 %v209, %v199
        %v211 = vadd.s32 %v210, %v201
        %v212 = vand.u32 %v189, 65535
        %v213 = vshrl.u32 %v189, 16
        %v214 = vand.u32 %v184, 65535
        %v215 = vshrl.u32 %v184, 16
        %v216 = vmul.u32 %v212, %v214
        %v217 = vmul.u32 %v212, %v215
        %v218 = vmul.u32 %v213, %v214
        %v219 = vmul.u32 %v213, %v215
        %v220 = vshll.u32 %v217, 16
        %v221 = vshrl.u32 %v217, 16
        %v222 = vshll.u32 %v218, 16
        %v223 = vshrl.u32 %v218, 16
        %vm224 = vc.u32 %v216, %v220
        %v225 = vsel %vm224, 1, 0
        %v226 = vadd.s32 %v216, %v220
        %v227 = vadd.s32 %v219, %v225
        %vm228 = vc.u32 %v226, %v222
        %v229 = vsel %vm228, 1, 0
        %v230 = vadd.s32 %v226, %v222
        %v231 = vadd.s32 %v227, %v229
        %v232 = vadd.s32 %v231, %v221
        %v233 = vadd.s32 %v232, %v223
        %v234 = vmul.u32 %v189, %v180
        %v235 = vadd.s32 %v211, %v230
        %vm236 = vc.u32 %v211, %v230
        %v237 = vadd.s32 %v233, 1
        %v238 = vsel %vm236, %v237, %v233
        %v239 = vadd.s32 %v234, %v238
        %v240 = vadd.s32 %v239, 536870912
        %v241 = vshrl.u32 %v240, 30
        %v242 = vshll.u32 %v241, 30
        %v243 = vsub.s32 %v239, %v242
        %vm244 = vcmp.lt.s32.totalorder %v243, 0
        %v245 = vsub.s32 0, %v243
        %v246 = vsel %vm244, %v245, %v243
        %v247 = vclz %v246
        %v248 = vsub.s32 %v247, 2
        %vm249 = vcmp.gt.s32.totalorder 0, %v248
        %v250 = vsel %vm249, 0, %v248
        %v251 = vsub.s32 32, %v250
        %v252 = vshll.u32 %v243, %v250
        %v253 = vshrl.u32 %v235, %v251
        %v254 = vor.u32 %v252, %v253
        %v255 = vsub.s32 4294967266, %v250
        %v256 = vadd.s32 %v255, 127
        %v257 = vshll.u32 %v256, 23
        %v258 = vor.u32 4788187, %v257
        %v259 = vand.u32 2147483647, %v258
        %v261 = vcvt.s32.f32 %v254
        %v262 = vmul.f32 %v261, %v259
        %v263 = vxor.u32 %v262, 2147483648
        %v264 = vsel %vm143, %v263, %v262
        %v265 = vsub.s32 4, %v241
        %v266 = vsel %vm143, %v265, %v241
        %v267 = vsel %vm142, %v140, %v264
        %v268 = vsel %vm142, 0, %v266
        %v269 = vmul.f32 %v267, %v267
        %v270 = vmul.f32 %v269, -0.001358992
        %v271 = vadd.f32 %v270, 0.041655596
        %v272 = vmul.f32 %v269, %v271
        %v273 = vadd.f32 %v272, -0.4999988
        %v274 = vmul.f32 %v269, %v273
        %v275 = vadd.f32 1.0, %v274
        %v276 = vmul.f32 %v267, %v267
        %v277 = vmul.f32 %v276, -0.00019511016
        %v278 = vadd.f32 %v277, 0.008332121
        %v279 = vmul.f32 %v276, %v278
        %v280 = vadd.f32 %v279, -0.16666654
        %v281 = vmul.f32 %v276, %v280
        %v282 = vadd.f32 %v281, 1.0
        %v283 = vmul.f32 %v282, %v267
        %vm284 = vweird.f32 %v140
        %v285 = vadd.s32 %v268, 3
        %v286 = vand.u32 %v285, 3
        %vm287 = vcmp.lt.s32.totalorder %v286, 2
        %vm288 = vcmp.eq.s32.totalorder %v286, 0
        %v289 = vxor.u32 %v283, 2147483648
        %v290 = vsel %vm288, %v275, %v289
        %vm291 = vcmp.eq.s32.totalorder %v286, 2
        %v292 = vxor.u32 %v275, 2147483648
        %v293 = vsel %vm291, %v292, %v283
        %v294 = vsel %vm287, %v290, %v293
        %v295 = vsel %vm284, nan, %v294
        %s296 = vtos %v295
        %s297 = smul.f32 %s296, 2507.3618
        %v298 = vstv %s139
        %v299 = vand.u32 2147483647, %v298
        %vm300 = vcmp.le.f32.partialorder %v299, 0.7853982
        %vm301 = vcmp.lt.s32.totalorder %v298, 0
        %v302 = vand.u32 %v298, 2139095040
        %v303 = vshrl.u32 %v302, 23
        %v304 = vsub.s32 %v303, 127
        %v305 = vand.u32 2147483647, %v298
        %v306 = vand.u32 %v305, 8388607
        %v307 = vor.u32 %v306, 8388608
        %v308 = vsub.s32 0, %v307
        %v309 = vadd.s32 %v304, 1
        %vm310 = vcmp.gt.s32.totalorder %v309, 0
        %v311 = vsel %vm310, %v309, 0
        %v312 = vshrl.u32 %v311, 5
        %v313 = vand.u32 %v311, 31
        %v314 = vsub.s32 32, %v313
        %v315 = vshrl.u32 683565275, %v314
        %v316 = vshll.u32 683565275, %v313
        %v317 = vshrl.u32 2475754826, %v314
        %v318 = vor.u32 %v316, %v317
        %v319 = vshll.u32 2475754826, %v313
        %v320 = vshrl.u32 2131351028, %v314
        %v321 = vor.u32 %v319, %v320
        %v322 = vshll.u32 2131351028, %v313
        %v323 = vshrl.u32 2102212464, %v314
        %v324 = vor.u32 %v322, %v323
        %v325 = vshll.u32 2102212464, %v313
        %v326 = vshrl.u32 920167782, %v314
        %v327 = vor.u32 %v325, %v326
        %v328 = vshll.u32 920167782, %v313
        %v329 = vshrl.u32 1326507024, %v314
        %v330 = vor.u32 %v328, %v329
        %vm331 = vcmp.lt.s32.totalorder %v312, 1
        %vm332 = vcmp.lt.s32.totalorder %v312, 2
        %vm333 = vcmp.lt.s32.totalorder %v312, 3
        %vm334 = vcmp.lt.s32.totalorder %v312, 4
        %v335 = vsel %vm331, %v315, %v318
        %v336 = vsel %vm334, %v324, 2102212464
        %v337 = vsel %vm333, %v321, %v336
        %v338 = vsel %vm332, %v335, %v337
        %v339 = vsel %vm331, %v318, %v321
        %v340 = vsel %vm334, %v327, 920167782
        %v341 = vsel %vm333, %v324, %v340
        %v342 = vsel %vm332, %v339, %v341
        %v343 = vsel %vm331, %v321, %v324
        %v344 = vsel %vm334, %v330, 1326507024
        %v345 = vsel %vm333, %v327, %v344
        %v346 = vsel %vm332, %v343, %v345
        %v347 = vshll.u32 %v307, 8
        %v348 = vand.u32 %v347, 65535
        %v349 = vshrl.u32 %v347, 16
        %v350 = vand.u32 %v346, 65535
        %v351 = vshrl.u32 %v346, 16
        %v352 = vmul.u32 %v348, %v350
        %v353 = vmul.u32 %v348, %v351
        %v354 = vmul.u32 %v349, %v350
        %v355 = vmul.u32 %v349, %v351
        %v356 = vshll.u32 %v353, 16
        %v357 = vshrl.u32 %v353, 16
        %v358 = vshll.u32 %v354, 16
        %v359 = vshrl.u32 %v354, 16
        %vm360 = vc.u32 %v352, %v356
        %v361 = vsel %vm360, 1, 0
        %v362 = vadd.s32 %v352, %v356
        %v363 = vadd.s32 %v355, %v361
        %vm364 = vc.u32 %v362, %v358
        %v365 = vsel %vm364, 1, 0
        %v366 = vadd.s32 %v362, %v358
        %v367 = vadd.s32 %v363, %v365
        %v368 = vadd.s32 %v367, %v357
        %v369 = vadd.s32 %v368, %v359
        %v370 = vand.u32 %v347, 65535
        %v371 = vshrl.u32 %v347, 16
        %v372 = vand.u32 %v342, 65535
        %v373 = vshrl.u32 %v342, 16
        %v374 = vmul.u32 %v370, %v372
        %v375 = vmul.u32 %v370, %v373
        %v376 = vmul.u32 %v371, %v372
        %v377 = vmul.u32 %v371, %v373
        %v378 = vshll.u32 %v375, 16
        %v379 = vshrl.u32 %v375, 16
        %v380 = vshll.u32 %v376, 16
        %v381 = vshrl.u32 %v376, 16
        %vm382 = vc.u32 %v374, %v378
        %v383 = vsel %vm382, 1, 0
        %v384 = vadd.s32 %v374, %v378
        %v385 = vadd.s32 %v377, %v383
        %vm386 = vc.u32 %v384, %v380
        %v387 = vsel %vm386, 1, 0
        %v388 = vadd.s32 %v384, %v380
        %v389 = vadd.s32 %v385, %v387
        %v390 = vadd.s32 %v389, %v379
        %v391 = vadd.s32 %v390, %v381
        %v392 = vmul.u32 %v347, %v338
        %v393 = vadd.s32 %v369, %v388
        %vm394 = vc.u32 %v369, %v388
        %v395 = vadd.s32 %v391, 1
        %v396 = vsel %vm394, %v395, %v391
        %v397 = vadd.s32 %v392, %v396
        %v398 = vadd.s32 %v397, 536870912
        %v399 = vshrl.u32 %v398, 30
        %v400 = vshll.u32 %v399, 30
        %v401 = vsub.s32 %v397, %v400
        %vm402 = vcmp.lt.s32.totalorder %v401, 0
        %v403 = vsub.s32 0, %v401
        %v404 = vsel %vm402, %v403, %v401
        %v405 = vclz %v404
        %v406 = vsub.s32 %v405, 2
        %vm407 = vcmp.gt.s32.totalorder 0, %v406
        %v408 = vsel %vm407, 0, %v406
        %v409 = vsub.s32 32, %v408
        %v410 = vshll.u32 %v401, %v408
        %v411 = vshrl.u32 %v393, %v409
        %v412 = vor.u32 %v410, %v411
        %v413 = vsub.s32 4294967266, %v408
        %v414 = vadd.s32 %v413, 127
        %v415 = vshll.u32 %v414, 23
        %v416 = vor.u32 4788187, %v415
        %v417 = vand.u32 2147483647, %v416
        %v419 = vcvt.s32.f32 %v412
        %v420 = vmul.f32 %v419, %v417
        %v421 = vxor.u32 %v420, 2147483648
        %v422 = vsel %vm301, %v421, %v420
        %v423 = vsub.s32 4, %v399
        %v424 = vsel %vm301, %v423, %v399
        %v425 = vsel %vm300, %v298, %v422
        %v426 = vsel %vm300, 0, %v424
        %v427 = vmul.f32 %v425, %v425
        %v428 = vmul.f32 %v427, -0.001358992
        %v429 = vadd.f32 %v428, 0.041655596
        %v430 = vmul.f32 %v427, %v429
        %v431 = vadd.f32 %v430, -0.4999988
        %v432 = vmul.f32 %v427, %v431
        %v433 = vadd.f32 1.0, %v432
        %v434 = vmul.f32 %v425, %v425
        %v435 = vmul.f32 %v434, -0.00019511016
        %v436 = vadd.f32 %v435, 0.008332121
        %v437 = vmul.f32 %v434, %v436
        %v438 = vadd.f32 %v437, -0.16666654
        %v439 = vmul.f32 %v434, %v438
        %v440 = vadd.f32 %v439, 1.0
        %v441 = vmul.f32 %v440, %v425
        %vm442 = vweird.f32 %v298
        %v443 = vand.u32 %v426, 3
        %vm444 = vcmp.lt.s32.totalorder %v443, 2
        %vm445 = vcmp.eq.s32.totalorder %v443, 0
        %v446 = vxor.u32 %v441, 2147483648
        %v447 = vsel %vm445, %v433, %v446
        %vm448 = vcmp.eq.s32.totalorder %v443, 2
        %v449 = vxor.u32 %v433, 2147483648
        %v450 = vsel %vm448, %v449, %v441
        %v451 = vsel %vm444, %v447, %v450
        %v452 = vsel %vm442, nan, %v451
        %s453 = vtos %v452
        %s454 = smul.f32 %s453, 2.104418
        %v455 = vld [vmem:[%s118] sm:$0xff]
        %s456 = scalar_lea.vmem %s118, 8 [#allocation4]
        %v457 = vld [vmem:[%s456] sm:$0xff]
        %v458 = vlog2.pop %v455
        %v459 = vmul.f32 %v458, 0.6931472
        %v460 = vmul.f32 %v459, -3.2
        %v461 = vmul.f32 %v460, 1.442695
        %v462 = vpow.pop %v461
        %v463 = vmul.f32 %v457, 0.00013357807
        %v464 = vadd.f32 %v463, 1.0
        %v465 = vmul.f32 %v455, %v455
        %v466 = vmul.f32 %v457, -1.1921177
        %v467 = vadd.f32 %v466, 2788.907
        %v468 = vmul.f32 %v467, %v462
        %v469 = vmul.f32 %v464, %v455
        %v470 = vmul.f32 %v469, 2427.9592
        %v471 = vsub.f32 %v468, %v470
        %v472 = vmul.f32 %v457, 1.7856678
        %v473 = vadd.f32 %v472, 360.94766
        %v474 = vsub.f32 %v471, %v473
        %v475 = vmul.f32 %v457, 6.6789034e-05
        %v476 = vsub.f32 1.5, %v475
        %v477 = vmul.f32 %v457, %v457
        %v478 = vmul.f32 %v476, %v477
        %v479 = vmul.f32 %v478, %v455
        %v480 = vsub.f32 %v474, %v479
        %v481 = vstv %s297
        %v482 = vmul.f32 %v481, %v469
        %v483 = vsub.f32 %v480, %v482
        %v484 = vstv %s454
        %v485 = vmul.f32 %v465, %v484
        %v486 = vsub.f32 %v483, %v485
        %v487 = vsub.f32 1.0, %v463
        %v488 = vmul.f32 %v465, %v487
        %v489 = vmul.f32 %v455, 0.00023852606
        %v490 = vadd.f32 %v488, %v489
        %v491 = vrcp.pop %v490
        %v492 = vmul.f32 %v490, %v491
        %v493 = vsub.f32 2.0, %v492
        %v494 = vmul.f32 %v491, %v493
        %v495 = vmul.f32 %v490, %v494
        %v496 = vsub.f32 2.0, %v495
        %v497 = vmul.f32 %v494, %v496
        %v498 = vmul.f32 %v486, %v497
        %499 = vst [vmem:[%s137] sm:$0xff] %v457
        %s500 = scalar_lea.vmem %s137, 8 [#allocation7]
        %501 = vst [vmem:[%s500] sm:$0xff] %v498
        %s502 = sand.u32 %s54, 1
        %s503 = scalar_lea.sflag [#allocation6], %s502
        %s504 = sand.u32 %s54, 1
        %s505 = smul.addr %s504, 16
        %s506 = scalar_lea.vmem [#allocation7], %s505
        // Predicated region
        $region29: #{tpu_custom_call.1} parent=23 // pred_check
          %p507 = pneg %p64
        $region30: #{tpu_custom_call.1} parent=23 // pred_check_branch
          %509 = sbr.rel (%p507) target = $region32
        $region31: #{tpu_custom_call.1} parent=23 // pred_region
          %511 = vsyncadd %s503, 0
          %s512 = smul.addr %s20, 8
          %s513 = scalar_lea.hbm %s2, %s512
          %s514 = sshll.u32 %s506, 4
          %s515 = int_to_ptr.vmem [resolvable:$true] %s514
          %s516 = sshll.u32 %s513, 4
          %s517 = int_to_ptr.hbm [resolvable:$true] %s516
          %522 = dma.vmem_to_hbm [thread:$0]  %s515, 256, %s517, %s503, 128, 256, 8
        $region32: #{tpu_custom_call.1} parent=23 // pred_fallthru
          _
      $region24: #{tpu_custom_call.1} parent=5 // pred_fallthru
        _
      %p523 = scmp.le.s32.totalorder 2, %s15
      // Predicated region
      $region33: #{tpu_custom_call.1} parent=5 // pred_check
        %p524 = pneg %p523
      $region34: #{tpu_custom_call.1} parent=5 // pred_check_branch
        %526 = sbr.rel (%p524) target = $region36
      $region35: #{tpu_custom_call.1} parent=5 // pred_region
        %s527 = ssub.s32 %s15, 2
        // Predicated region
        $region37: #{tpu_custom_call.1} parent=35 // pred_check
          %p528 = pneg %p70
        $region38: #{tpu_custom_call.1} parent=35 // pred_check_branch
          %530 = sbr.rel (%p528) target = $region40
        $region39: #{tpu_custom_call.1} parent=35 // pred_region
          %s531 = sand.u32 %s55, 1
          %s532 = scalar_lea.sflag [#allocation6], %s531
          %s533 = sand.u32 %s55, 1
          %s534 = smul.addr %s533, 16
          %s535 = scalar_lea.vmem [#allocation7], %s534
          %537 = dma.done %s532, 256
        $region40: #{tpu_custom_call.1} parent=35 // pred_fallthru
          _
      $region36: #{tpu_custom_call.1} parent=5 // pred_fallthru
        _
    $region6: #{tpu_custom_call.1} parent=1 // loop_footer
      %s19 = sadd.s32 1, %s15
    $region7: #{tpu_custom_call.1} parent=1 // loop_footer_branch
      %14 = sbr.rel target = $region3
    $region8: #{tpu_custom_call.1} parent=1 // loop_exit
      _
    %538 = vsyncpa [#allocation5], 1
    %s539 = scalar_lea.sflag [#allocation5], 1
    %540 = vsyncpa %s539, 1
    %541 = vsyncpa [#allocation6], 1
    %s542 = scalar_lea.sflag [#allocation6], 1
    %543 = vsyncpa %s542, 1

</llo_original>
